<compile_context>
chip_gen: v6e
topology: v6e:2x2x1
jax: 0.10.0
libtpu: 0.0.40
codegen_flags: <defaults>
</compile_context>

<pallas_src>
import functools
import math

import jax
import jax.numpy as jnp
from jax.experimental import pallas as pl
from jax.experimental.pallas import tpu as pltpu

_VMEM_LIMIT = 48 * 1024 * 1024  # above the 16/32 MiB scoped defaults, headroom on v7x (64 MiB)


def _fit(dim, pref, align):
    """Largest tile t <= pref with t % align == 0 and dim % t == 0; else full dim."""
    t = min(pref, dim)
    t -= t % align
    while t >= align:
        if dim % t == 0:
            return t
        t -= align
    return dim


# ----------------------------- elementwise helpers (in-kernel) -----------------------------

def _erf(x):
    # Abramowitz & Stegun 7.1.26 rational approximation (|err| < 1.5e-7), built only from
    # ops guaranteed to lower in Mosaic (exp / mul / add / select).
    a1, a2, a3, a4, a5 = 0.254829592, -0.284496736, 1.421413741, -1.453152027, 1.061405429
    p = 0.3275911
    sgn = jnp.where(x >= 0.0, 1.0, -1.0)
    ax = jnp.abs(x)
    t = 1.0 / (1.0 + p * ax)
    poly = ((((a5 * t + a4) * t + a3) * t + a2) * t + a1) * t
    return sgn * (1.0 - poly * jnp.exp(-ax * ax))


def _gelu_exact(x):
    # Exact (erf) GELU, matching HF BERT's "gelu" activation.
    return 0.5 * x * (1.0 + _erf(x * 0.7071067811865476))


# ----------------------------- tiled matmul (+ fused bias / GELU) -----------------------------

def _matmul_kernel(x_ref, w_ref, b_ref, o_ref, acc_ref, *, activation):
    k = pl.program_id(2)

    @pl.when(k == 0)
    def _():
        acc_ref[...] = jnp.zeros_like(acc_ref)

    acc_ref[...] += jnp.dot(x_ref[...], w_ref[...], preferred_element_type=jnp.float32)

    @pl.when(k == pl.num_programs(2) - 1)
    def _():
        y = acc_ref[...] + b_ref[...].astype(jnp.float32)
        if activation == "gelu":
            y = _gelu_exact(y)
        o_ref[...] = y.astype(o_ref.dtype)


def matmul_bias(x, w, b, activation=None, tm=256, tn=512, tk=512):
    """o = act(x @ w + b).  x:[M,K] bf16, w:[K,N] bf16, b:[N] f32 -> [M,N] bf16."""
    M, K = x.shape
    K2, N = w.shape
    assert K == K2
    tm = _fit(M, tm, 8)
    tn = _fit(N, tn, 128)
    tk = _fit(K, tk, 128)
    grid = (M // tm, N // tn, K // tk)
    return pl.pallas_call(
        functools.partial(_matmul_kernel, activation=activation),
        out_shape=jax.ShapeDtypeStruct((M, N), x.dtype),
        grid_spec=pltpu.PrefetchScalarGridSpec(
            num_scalar_prefetch=0, grid=grid,
            in_specs=[
                pl.BlockSpec((tm, tk), lambda i, j, k: (i, k)),
                pl.BlockSpec((tk, tn), lambda i, j, k: (k, j)),
                pl.BlockSpec((1, tn), lambda i, j, k: (0, j)),
            ],
            out_specs=pl.BlockSpec((tm, tn), lambda i, j, k: (i, j)),
            scratch_shapes=[pltpu.VMEM((tm, tn), jnp.float32)]),
        compiler_params=pltpu.CompilerParams(
            dimension_semantics=("parallel", "parallel", "arbitrary"),
            vmem_limit_bytes=_VMEM_LIMIT),
    )(x, w, b.reshape(1, N))


# -------------------- tiled matmul with fused bias + residual + LayerNorm --------------------

def _matmul_res_ln_kernel(x_ref, w_ref, b_ref, r_ref, g_ref, bb_ref, o_ref, acc_ref, *, eps):
    k = pl.program_id(1)

    @pl.when(k == 0)
    def _():
        acc_ref[...] = jnp.zeros_like(acc_ref)

    acc_ref[...] += jnp.dot(x_ref[...], w_ref[...], preferred_element_type=jnp.float32)

    @pl.when(k == pl.num_programs(1) - 1)
    def _():
        y = acc_ref[...] + b_ref[...].astype(jnp.float32) + r_ref[...].astype(jnp.float32)
        mean = jnp.mean(y, axis=-1, keepdims=True)
        var = jnp.mean(jnp.square(y - mean), axis=-1, keepdims=True)
        y = (y - mean) * jax.lax.rsqrt(var + eps)
        y = y * g_ref[...].astype(jnp.float32) + bb_ref[...].astype(jnp.float32)
        o_ref[...] = y.astype(o_ref.dtype)


def matmul_bias_residual_ln(x, w, b, residual, gamma, beta, eps=1e-12, tm=256, tk=512):
    """o = LayerNorm(x @ w + b + residual).  Hidden dim (N) kept whole for the row reduction."""
    M, K = x.shape
    K2, N = w.shape
    assert K == K2 and residual.shape == (M, N)
    tm = _fit(M, tm, 8)
    tk = _fit(K, tk, 128)
    grid = (M // tm, K // tk)
    return pl.pallas_call(
        functools.partial(_matmul_res_ln_kernel, eps=eps),
        out_shape=jax.ShapeDtypeStruct((M, N), x.dtype),
        grid_spec=pltpu.PrefetchScalarGridSpec(
            num_scalar_prefetch=0, grid=grid,
            in_specs=[
                pl.BlockSpec((tm, tk), lambda i, k: (i, k)),
                pl.BlockSpec((tk, N), lambda i, k: (k, 0)),
                pl.BlockSpec((1, N), lambda i, k: (0, 0)),
                pl.BlockSpec((tm, N), lambda i, k: (i, 0)),
                pl.BlockSpec((1, N), lambda i, k: (0, 0)),
                pl.BlockSpec((1, N), lambda i, k: (0, 0)),
            ],
            out_specs=pl.BlockSpec((tm, N), lambda i, k: (i, 0)),
            scratch_shapes=[pltpu.VMEM((tm, N), jnp.float32)]),
        compiler_params=pltpu.CompilerParams(
            dimension_semantics=("parallel", "arbitrary"),
            vmem_limit_bytes=_VMEM_LIMIT),
    )(x, w, b.reshape(1, N), residual, gamma.reshape(1, N), beta.reshape(1, N))


# ----------------------------- standalone row-tiled LayerNorm -----------------------------

def _layernorm_kernel(x_ref, g_ref, b_ref, o_ref, *, eps):
    x = x_ref[...].astype(jnp.float32)
    mean = jnp.mean(x, axis=-1, keepdims=True)
    var = jnp.mean(jnp.square(x - mean), axis=-1, keepdims=True)
    y = (x - mean) * jax.lax.rsqrt(var + eps)
    o_ref[...] = (y * g_ref[...].astype(jnp.float32) + b_ref[...].astype(jnp.float32)).astype(o_ref.dtype)


def layernorm(x, gamma, beta, eps=1e-12, tm=512):
    M, H = x.shape
    tm = _fit(M, tm, 8)
    return pl.pallas_call(
        functools.partial(_layernorm_kernel, eps=eps),
        out_shape=jax.ShapeDtypeStruct((M, H), x.dtype),
        grid=(M // tm,),
        in_specs=[
            pl.BlockSpec((tm, H), lambda i: (i, 0)),
            pl.BlockSpec((1, H), lambda i: (0, 0)),
            pl.BlockSpec((1, H), lambda i: (0, 0)),
        ],
        out_specs=pl.BlockSpec((tm, H), lambda i: (i, 0)),
        compiler_params=pltpu.CompilerParams(
            dimension_semantics=("parallel",),
            vmem_limit_bytes=_VMEM_LIMIT),
    )(x, gamma.reshape(1, H), beta.reshape(1, H))


# ----------------------------- flash-style attention -----------------------------

def _flash_attn_kernel(q_ref, k_ref, v_ref, mask_ref, o_ref, m_sc, l_sc, acc_sc, *, scale):
    ki = pl.program_id(3)

    @pl.when(ki == 0)
    def _():
        m_sc[...] = jnp.full_like(m_sc, -jnp.inf)
        l_sc[...] = jnp.zeros_like(l_sc)
        acc_sc[...] = jnp.zeros_like(acc_sc)

    # scores for this (q-tile, kv-tile): (tq, tkv) in f32
    s = jax.lax.dot_general(q_ref[...], k_ref[...],
                            (((1,), (1,)), ((), ())),
                            preferred_element_type=jnp.float32) * scale
    s = s + mask_ref[...].astype(jnp.float32)          # (1, tkv) broadcast over queries

    m_prev = m_sc[...]
    m_new = jnp.maximum(m_prev, jnp.max(s, axis=-1, keepdims=True))
    alpha = jnp.exp(m_prev - m_new)
    p = jnp.exp(s - m_new)
    l_sc[...] = alpha * l_sc[...] + jnp.sum(p, axis=-1, keepdims=True)
    acc_sc[...] = alpha * acc_sc[...] + jax.lax.dot_general(
        p.astype(v_ref.dtype), v_ref[...],
        (((1,), (0,)), ((), ())), preferred_element_type=jnp.float32)
    m_sc[...] = m_new

    @pl.when(ki == pl.num_programs(3) - 1)
    def _():
        # Note: a fully-masked row degenerates to uniform attention over padding
        # (same behavior as HF BERT with an all-zero attention_mask row).
        o_ref[...] = (acc_sc[...] * pl.reciprocal(l_sc[...], approx=True)).astype(o_ref.dtype)


def flash_attention(q, k, v, add_mask, scale, tq=128, tkv=128):
    """q,k,v:[B, nH, S, dh] bf16, add_mask:[B, 1, S] f32 (0 or -1e9) -> [B, nH, S, dh]."""
    B, nH, S, dh = q.shape
    tq = _fit(S, tq, 8)
    tkv = _fit(S, tkv, 128)
    grid = (B, nH, S // tq, S // tkv)
    return pl.pallas_call(
        functools.partial(_flash_attn_kernel, scale=scale),
        out_shape=jax.ShapeDtypeStruct((B, nH, S, dh), q.dtype),
        grid_spec=pltpu.PrefetchScalarGridSpec(
            num_scalar_prefetch=0, grid=grid,
            in_specs=[
                pl.BlockSpec((None, None, tq, dh), lambda b, h, qi, ki: (b, h, qi, 0)),
                pl.BlockSpec((None, None, tkv, dh), lambda b, h, qi, ki: (b, h, ki, 0)),
                pl.BlockSpec((None, None, tkv, dh), lambda b, h, qi, ki: (b, h, ki, 0)),
                pl.BlockSpec((None, 1, tkv), lambda b, h, qi, ki: (b, 0, ki)),
            ],
            out_specs=pl.BlockSpec((None, None, tq, dh), lambda b, h, qi, ki: (b, h, qi, 0)),
            scratch_shapes=[pltpu.VMEM((tq, 1), jnp.float32),
                            pltpu.VMEM((tq, 1), jnp.float32),
                            pltpu.VMEM((tq, dh), jnp.float32)]),
        compiler_params=pltpu.CompilerParams(
            dimension_semantics=("parallel", "parallel", "parallel", "arbitrary"),
            vmem_limit_bytes=_VMEM_LIMIT),
    )(q, k, v, add_mask)


# ----------------------------- cosine similarity -----------------------------

def _cosine_kernel(a_ref, b_ref, o_ref, *, eps):
    a = a_ref[...].astype(jnp.float32)
    b = b_ref[...].astype(jnp.float32)
    w12 = jnp.sum(a * b, axis=-1, keepdims=True)
    w1 = jnp.sum(a * a, axis=-1, keepdims=True)
    w2 = jnp.sum(b * b, axis=-1, keepdims=True)
    sim = w12 / jnp.sqrt(jnp.maximum(w1 * w2, eps * eps))         # (B, 1)
    # lane-dense store: broadcast the per-row scalar across 128 lanes
    o_ref[...] = jnp.broadcast_to(sim, o_ref.shape).astype(o_ref.dtype)


def cosine_similarity(a, b, eps=1e-6):
    """Matches torch.nn.CosineSimilarity(dim=1, eps): dot / sqrt(max(|a|^2|b|^2, eps^2))."""
    B, H = a.shape
    out = pl.pallas_call(
        functools.partial(_cosine_kernel, eps=eps),
        out_shape=jax.ShapeDtypeStruct((B, 128), jnp.float32),
        grid=(1,),
        in_specs=[
            pl.BlockSpec((B, H), lambda i: (0, 0)),
            pl.BlockSpec((B, H), lambda i: (0, 0)),
        ],
        out_specs=pl.BlockSpec((B, 128), lambda i: (0, 0)),
    )(a, b)
    return out[:, 0]


# ----------------------------- BERT encoder (glue + kernels) -----------------------------

def init_bert_params(key, cfg, dtype=jnp.bfloat16):
    H, I = cfg["hidden"], cfg["intermediate"]
    std = 0.02

    def normal(k, shape):
        return (std * jax.random.normal(k, shape, dtype=jnp.float32)).astype(dtype)

    keys = jax.random.split(key, 4 + cfg["layers"])
    params = {
        "word_emb": normal(keys[0], (cfg["vocab"], H)),
        "pos_emb": normal(keys[1], (cfg["max_pos"], H)),
        "type_emb": normal(keys[2], (cfg["type_vocab"], H)),
        "emb_ln_g": jnp.ones((H,), jnp.float32),
        "emb_ln_b": jnp.zeros((H,), jnp.float32),
        "layers": [],
    }
    for li in range(cfg["layers"]):
        lk = jax.random.split(keys[4 + li], 4)
        params["layers"].append({
            # fused QKV projection weight [H, 3H] = [Wq | Wk | Wv]
            "w_qkv": normal(lk[0], (H, 3 * H)), "b_qkv": jnp.zeros((3 * H,), jnp.float32),
            "wo": normal(lk[1], (H, H)), "bo": jnp.zeros((H,), jnp.float32),
            "ln1_g": jnp.ones((H,), jnp.float32), "ln1_b": jnp.zeros((H,), jnp.float32),
            "w1": normal(lk[2], (H, I)), "b1": jnp.zeros((I,), jnp.float32),
            "w2": normal(lk[3], (I, H)), "b2": jnp.zeros((H,), jnp.float32),
            "ln2_g": jnp.ones((H,), jnp.float32), "ln2_b": jnp.zeros((H,), jnp.float32),
        })
    return params


def bert_encode(params, input_ids, token_type_ids, attention_mask, cfg):
    """Returns last_hidden_state [B, S, H] (== HF BertModel outputs[0])."""
    B, S = input_ids.shape
    H, nH = cfg["hidden"], cfg["heads"]
    dh = H // nH

    # Embedding lookups (gather) are glue; activations in bf16.
    pos_ids = jnp.arange(S, dtype=jnp.int32)[None, :]
    emb = (params["word_emb"][input_ids]
           + params["pos_emb"][pos_ids]
           + params["type_emb"][token_type_ids]).astype(jnp.bfloat16)
    x = layernorm(emb.reshape(B * S, H), params["emb_ln_g"], params["emb_ln_b"])

    # Additive attention mask kept rank-2: [B, 1, S]; broadcast happens inside the kernel.
    add_mask = ((1.0 - attention_mask.astype(jnp.float32)) * (-1e9)).reshape(B, 1, S)

    scale = 1.0 / math.sqrt(dh)

    for layer in params["layers"]:
        # --- self-attention (fused QKV projection, flash attention, fused Wo+residual+LN) ---
        qkv = matmul_bias(x, layer["w_qkv"], layer["b_qkv"])          # [B*S, 3H]
        q = qkv[:, :H].reshape(B, S, nH, dh).transpose(0, 2, 1, 3)    # [B, nH, S, dh]
        k = qkv[:, H:2 * H].reshape(B, S, nH, dh).transpose(0, 2, 1, 3)
        v = qkv[:, 2 * H:].reshape(B, S, nH, dh).transpose(0, 2, 1, 3)
        ctx = flash_attention(q, k, v, add_mask, scale)               # [B, nH, S, dh]
        ctx = ctx.transpose(0, 2, 1, 3).reshape(B * S, H)
        x = matmul_bias_residual_ln(ctx, layer["wo"], layer["bo"], x,
                                    layer["ln1_g"], layer["ln1_b"])

        # --- feed-forward (fused bias+GELU, fused W2+residual+LN) ---
        h = matmul_bias(x, layer["w1"], layer["b1"], activation="gelu")
        x = matmul_bias_residual_ln(h, layer["w2"], layer["b2"], x,
                                    layer["ln2_g"], layer["ln2_b"])

    return x.reshape(B, S, H)


def siamese_bert_forward(params, enc1, enc2, cfg):
    """enc{1,2} = (input_ids, token_type_ids, attention_mask). Returns cosine sim [B]."""
    B = enc1[0].shape[0]
    # Batch the two siamese passes: run the encoder once on [2B, S] so weights are
    # read from HBM once and every matmul has 2x the rows.
    ids = jnp.concatenate([enc1[0], enc2[0]], axis=0)
    types = jnp.concatenate([enc1[1], enc2[1]], axis=0)
    masks = jnp.concatenate([enc1[2], enc2[2]], axis=0)
    out = bert_encode(params, ids, types, masks, cfg)   # [2B, S, H]
    cls = out[:, 0, :]                                  # CLS token of last_hidden_state
    return cosine_similarity(cls[:B], cls[B:], eps=1e-6)


# ----------------------------- main -----------------------------

if __name__ == "__main__":
    cfg = dict(vocab=128, hidden=32, heads=4, layers=2, intermediate=64,
               max_pos=16, type_vocab=2)
    B, S = 2, 8

    key = jax.random.PRNGKey(0)
    k_par, k_ids1, k_ids2 = jax.random.split(key, 3)

    params = init_bert_params(k_par, cfg)

    ids1 = jax.random.randint(k_ids1, (B, S), 0, cfg["vocab"], dtype=jnp.int32)
    ids2 = jax.random.randint(k_ids2, (B, S), 0, cfg["vocab"], dtype=jnp.int32)
    type1 = jnp.zeros((B, S), jnp.int32)
    type2 = jnp.zeros((B, S), jnp.int32)
    # attention masks: first sequence full, second sequence has 2 padding tokens
    mask1 = jnp.ones((B, S), jnp.int32)
    mask2 = jnp.concatenate(
        [jnp.ones((B, S - 2), jnp.int32), jnp.zeros((B, 2), jnp.int32)], axis=1)

    sims = siamese_bert_forward(params, (ids1, type1, mask1), (ids2, type2, mask2), cfg)
    sims = jax.block_until_ready(sims)
    assert sims.shape == (B,)
    assert bool(jnp.all(jnp.isfinite(sims)))
    print("KERNEL_OK")
</pallas_src>

<mosaic_0001>
module attributes {stable_mosaic.version = 11 : i64} {
  func.func @_layernorm_kernel(%arg0: i32, %arg1: memref<32x32xbf16, #tpu.memory_space<vmem>>, %arg2: memref<1x32xf32, #tpu.memory_space<vmem>>, %arg3: memref<1x32xf32, #tpu.memory_space<vmem>>, %arg4: memref<32x32xbf16, #tpu.memory_space<vmem>>) attributes {dimension_semantics = [#tpu.dimension_semantics<parallel>], iteration_bounds = array<i64: 1>, scalar_prefetch = 0 : i64, scratch_operands = 0 : i64, tpu.core_type = #tpu.core_type<tc>, window_params = [{transform_indices = @transform_0, window_bounds = array<i64: 32, 32>}, {pipeline_mode = #tpu.pipeline_mode<synchronous>, transform_indices = @transform_1, window_bounds = array<i64: 1, 32>}, {pipeline_mode = #tpu.pipeline_mode<synchronous>, transform_indices = @transform_2, window_bounds = array<i64: 1, 32>}, {transform_indices = @transform_3, window_bounds = array<i64: 32, 32>}]} {
    %c0 = arith.constant 0 : index
    %c0_0 = arith.constant 0 : index
    %0 = vector.load %arg1[%c0, %c0_0] : memref<32x32xbf16, #tpu.memory_space<vmem>>, vector<32x32xbf16>
    %1 = arith.extf %0 : vector<32x32xbf16> to vector<32x32xf32>
    %cst = arith.constant dense<0.000000e+00> : vector<32xf32>
    %2 = vector.multi_reduction <add>, %1, %cst [1] : vector<32x32xf32> to vector<32xf32>
    %3 = vector.shape_cast %2 : vector<32xf32> to vector<32x1xf32>
    %cst_1 = arith.constant 3.200000e+01 : f32
    %4 = vector.broadcast %cst_1 : f32 to vector<32x1xf32>
    %5 = arith.divf %3, %4 : vector<32x1xf32>
    %6 = vector.broadcast %5 : vector<32x1xf32> to vector<32x32xf32>
    %7 = arith.subf %1, %6 : vector<32x32xf32>
    %8 = arith.mulf %7, %7 : vector<32x32xf32>
    %cst_2 = arith.constant dense<0.000000e+00> : vector<32xf32>
    %9 = vector.multi_reduction <add>, %8, %cst_2 [1] : vector<32x32xf32> to vector<32xf32>
    %10 = vector.shape_cast %9 : vector<32xf32> to vector<32x1xf32>
    %cst_3 = arith.constant 3.200000e+01 : f32
    %11 = vector.broadcast %cst_3 : f32 to vector<32x1xf32>
    %12 = arith.divf %10, %11 : vector<32x1xf32>
    %13 = vector.broadcast %5 : vector<32x1xf32> to vector<32x32xf32>
    %14 = arith.subf %1, %13 : vector<32x32xf32>
    %cst_4 = arith.constant 9.99999996E-13 : f32
    %15 = vector.broadcast %cst_4 : f32 to vector<32x1xf32>
    %16 = arith.addf %12, %15 : vector<32x1xf32>
    %17 = math.rsqrt %16 : vector<32x1xf32>
    %18 = vector.broadcast %17 : vector<32x1xf32> to vector<32x32xf32>
    %19 = arith.mulf %14, %18 : vector<32x32xf32>
    %c0_5 = arith.constant 0 : index
    %c0_6 = arith.constant 0 : index
    %20 = vector.load %arg2[%c0_5, %c0_6] : memref<1x32xf32, #tpu.memory_space<vmem>>, vector<1x32xf32>
    %21 = vector.broadcast %20 : vector<1x32xf32> to vector<32x32xf32>
    %22 = arith.mulf %19, %21 : vector<32x32xf32>
    %c0_7 = arith.constant 0 : index
    %c0_8 = arith.constant 0 : index
    %23 = vector.load %arg3[%c0_7, %c0_8] : memref<1x32xf32, #tpu.memory_space<vmem>>, vector<1x32xf32>
    %24 = vector.broadcast %23 : vector<1x32xf32> to vector<32x32xf32>
    %25 = arith.addf %22, %24 : vector<32x32xf32>
    %26 = arith.truncf %25 : vector<32x32xf32> to vector<32x32xbf16>
    %c0_9 = arith.constant 0 : index
    %c0_10 = arith.constant 0 : index
    %27 = vector.load %arg4[%c0_9, %c0_10] : memref<32x32xbf16, #tpu.memory_space<vmem>>, vector<32x32xbf16>
    tpu.vector_store %arg4[%c0_9, %c0_10], %26 {strides = array<i32>} : memref<32x32xbf16, #tpu.memory_space<vmem>>, vector<32x32xbf16>,
    return
  }
  func.func @transform_0(%arg0: i32) -> (i32, i32) {
    %c0_i32 = arith.constant 0 : i32
    %c0_i32_0 = arith.constant 0 : i32
    return %arg0, %c0_i32 : i32, i32
  }
  func.func @transform_1(%arg0: i32) -> (i32, i32) {
    %c0_i32 = arith.constant 0 : i32
    %c0_i32_0 = arith.constant 0 : i32
    %c0_i32_1 = arith.constant 0 : i32
    return %c0_i32, %c0_i32_0 : i32, i32
  }
  func.func @transform_2(%arg0: i32) -> (i32, i32) {
    %c0_i32 = arith.constant 0 : i32
    %c0_i32_0 = arith.constant 0 : i32
    %c0_i32_1 = arith.constant 0 : i32
    return %c0_i32, %c0_i32_0 : i32, i32
  }
  func.func @transform_3(%arg0: i32) -> (i32, i32) {
    %c0_i32 = arith.constant 0 : i32
    %c0_i32_0 = arith.constant 0 : i32
    return %arg0, %c0_i32 : i32, i32
  }
}

</mosaic_0001>

<llo_original>
// kernel: tpu_custom_call.1
$region0: #{tpu_custom_call.1}
  #allocation0 [shape = 'u32[]', space=smem, size = 0x4, offset = 0x4, fixed_abs, tag = 'smem constant byte address 0x4 - core index']
  #allocation1 [shape = 'u32[144,128]{1,0:T(1,128)}', space=vmem, size = 0x12000, scoped, tag = 'internal scratch']
  %s0 = inlined_call_operand.hbm [shape: bf16[32,32], index: 0, kind: input, shape index: {}]
  %s1 = inlined_call_operand.vmem [shape: f32[1,32], index: 1, kind: input, shape index: {}]
  %s2 = inlined_call_operand.vmem [shape: f32[1,32], index: 2, kind: input, shape index: {}]
  %s3 = inlined_call_operand.hbm [shape: bf16[32,32], index: 3, kind: output, shape index: {}]
  %s4 = sld [smem:[#allocation0]]
  $region26: #{tpu_custom_call.1} parent=0
    _
  %s6 = ssub.s32 1, %s4
  %s7 = scalar_select 0, %s6, %s4
  $region1: #{tpu_custom_call.1} parent=0
    #allocation2 [shape = 'u8[8192]{0}', space=vmem, size = 0x2000, scoped, tag = 'input window, operand 0, single buffered']
    #allocation3 [shape = 's32[1]{0}', space=sflag, size = 0x4, scoped, tag = 'scoped memory for tpu_custom_call.1']
    #allocation4 [shape = 's32[1]{0}', space=sflag, size = 0x4, scoped, tag = 'scoped memory for tpu_custom_call.1']
    #allocation5 [shape = 'u8[8192]{0}', space=vmem, size = 0x2000, scoped, tag = 'output window, operand 0, single buffered']
    %8 = vsyncpa [#allocation3], 0
    %9 = vsyncpa [#allocation4], 0
    // Predicated region
    $region2: #{tpu_custom_call.1} parent=1 // pred_check
      _
    $region3: #{tpu_custom_call.1} parent=1 // pred_check_branch
      %11 = sbr.rel (0) target = $region5
    $region4: #{tpu_custom_call.1} parent=1 // pred_region
      %s13 = ssub.s32 256, 256
      %14 = vsyncadd [#allocation3], %s13
      %s15 = sshll.u32 [#allocation2], 4
      %s16 = int_to_ptr.vmem [resolvable:$true] %s15
      %21 = dma.hbm_to_vmem [thread:$0]  %s0, 256, %s16, [#allocation3], 64, 64, 4
    $region5: #{tpu_custom_call.1} parent=1 // pred_fallthru
      _
    // Predicated region
    $region6: #{tpu_custom_call.1} parent=1 // pred_check
      _
    $region7: #{tpu_custom_call.1} parent=1 // pred_check_branch
      %23 = sbr.rel (0) target = $region9
    $region8: #{tpu_custom_call.1} parent=1 // pred_region
      _
    $region9: #{tpu_custom_call.1} parent=1 // pred_fallthru
      _
    // Predicated region
    $region10: #{tpu_custom_call.1} parent=1 // pred_check
      _
    $region11: #{tpu_custom_call.1} parent=1 // pred_check_branch
      %25 = sbr.rel (0) target = $region13
    $region12: #{tpu_custom_call.1} parent=1 // pred_region
      _
    $region13: #{tpu_custom_call.1} parent=1 // pred_fallthru
      _
    // Predicated region
    $region14: #{tpu_custom_call.1} parent=1 // pred_check
      _
    $region15: #{tpu_custom_call.1} parent=1 // pred_check_branch
      %27 = sbr.rel (0) target = $region17
    $region16: #{tpu_custom_call.1} parent=1 // pred_region
      %28 = dma.done [#allocation3], 256
    $region17: #{tpu_custom_call.1} parent=1 // pred_fallthru
      _
    %v29 = vld [vmem:[#allocation2] sm:$0xf]
    %v30 = vld [vmem:[#allocation2 + $0x4] sm:$0xf]
    %v31 = vld [vmem:[#allocation2 + $0x8] sm:$0xf]
    %v32 = vld [vmem:[#allocation2 + $0xc] sm:$0xf]
    %v33 = vunpack.c.l.bf16 %v29
    %v34 = vunpack.c.l.bf16 %v30
    %v35 = vunpack.c.l.bf16 %v31
    %v36 = vunpack.c.l.bf16 %v32
    %vm37 = vcmask 261120
    %v38 = vsel %vm37, %v33, 0.0
    %39 = vadd.xlane.f32.xlu0 %v38
    %v40 = vpop.xlane.xlu0 %39
    %v41 = vsel %vm37, %v34, 0.0
    %42 = vadd.xlane.f32.xlu0 %v41
    %v43 = vpop.xlane.xlu0 %42
    %v44 = vsel %vm37, %v35, 0.0
    %45 = vadd.xlane.f32.xlu0 %v44
    %v46 = vpop.xlane.xlu0 %45
    %v47 = vsel %vm37, %v36, 0.0
    %48 = vadd.xlane.f32.xlu0 %v47
    %v49 = vpop.xlane.xlu0 %48
    %v50 = vrcp.pop 32.0
    %v51 = vmul.f32 %v40, %v50
    %v52 = vmul.f32 %v43, %v50
    %v53 = vmul.f32 %v46, %v50
    %v54 = vmul.f32 %v49, %v50
    %v55 = vsub.f32 %v33, %v51
    %v56 = vsub.f32 %v34, %v52
    %v57 = vsub.f32 %v35, %v53
    %v58 = vsub.f32 %v36, %v54
    %v59 = vmul.f32 %v55, %v55
    %v60 = vmul.f32 %v56, %v56
    %v61 = vmul.f32 %v57, %v57
    %v62 = vmul.f32 %v58, %v58
    %v63 = vsel %vm37, %v59, 0.0
    %64 = vadd.xlane.f32.xlu0 %v63
    %v65 = vpop.xlane.xlu0 %64
    %v66 = vsel %vm37, %v60, 0.0
    %67 = vadd.xlane.f32.xlu0 %v66
    %v68 = vpop.xlane.xlu0 %67
    %v69 = vsel %vm37, %v61, 0.0
    %70 = vadd.xlane.f32.xlu0 %v69
    %v71 = vpop.xlane.xlu0 %70
    %v72 = vsel %vm37, %v62, 0.0
    %73 = vadd.xlane.f32.xlu0 %v72
    %v74 = vpop.xlane.xlu0 %73
    %v75 = vmul.f32 %v65, %v50
    %v76 = vmul.f32 %v68, %v50
    %v77 = vmul.f32 %v71, %v50
    %v78 = vmul.f32 %v74, %v50
    %v79 = vadd.f32 %v75, 1e-12
    %v80 = vadd.f32 %v76, 1e-12
    %v81 = vadd.f32 %v77, 1e-12
    %v82 = vadd.f32 %v78, 1e-12
    %v83 = vrsqrt.pop %v79
    %v84 = vrsqrt.pop %v80
    %v85 = vrsqrt.pop %v81
    %v86 = vrsqrt.pop %v82
    %v87 = vmul.f32 %v55, %v83
    %v88 = vmul.f32 %v56, %v84
    %v89 = vmul.f32 %v57, %v85
    %v90 = vmul.f32 %v58, %v86
    %v91 = vld [vmem:[%s1] sm:$0x1]
    %v93 = vlaneseq
    %v94 = vshrl.u32 %v93, 7
    %v95 = vsub.s32 0, %v94
    %v96 = vrot.slane %v91, %v95
    %v98 = vmul.f32 %v87, %v96
    %v99 = vmul.f32 %v88, %v96
    %v100 = vmul.f32 %v89, %v96
    %v101 = vmul.f32 %v90, %v96
    %v102 = vld [vmem:[%s2] sm:$0x1]
    %v104 = vlaneseq
    %v105 = vshrl.u32 %v104, 7
    %v106 = vsub.s32 0, %v105
    %v107 = vrot.slane %v102, %v106
    %v109 = vadd.f32 %v98, %v107
    %v110 = vadd.f32 %v99, %v107
    %v111 = vadd.f32 %v100, %v107
    %v112 = vadd.f32 %v101, %v107
    %v113 = vpack.c.bf16 %v110, %v109
    %v114 = vpack.c.bf16 %v112, %v111
    %v117 = vunpack.c.l.b16 %v113
    %v118 = vunpack.c.h.b16 %v113
    %v119 = vunpack.c.l.b16 %v114
    %v120 = vunpack.c.h.b16 %v114
    %v121 = vpack.c.b16 %v117, %v117
    %v122 = vpack.c.b16 %v118, %v118
    %v123 = vpack.c.b16 %v119, %v119
    %v124 = vpack.c.b16 %v120, %v120
    %vm129 = vcmask 257024
    %130 = vst.msk [vmem:[#allocation5] sm:$0xf] %vm129, %v121
    %131 = vst.msk [vmem:[#allocation5 + $0x4] sm:$0xf] %vm129, %v122
    %132 = vst.msk [vmem:[#allocation5 + $0x8] sm:$0xf] %vm129, %v123
    %133 = vst.msk [vmem:[#allocation5 + $0xc] sm:$0xf] %vm129, %v124
    // Predicated region
    $region18: #{tpu_custom_call.1} parent=1 // pred_check
      _
    $region19: #{tpu_custom_call.1} parent=1 // pred_check_branch
      %135 = sbr.rel (0) target = $region21
    $region20: #{tpu_custom_call.1} parent=1 // pred_region
      %s137 = ssub.s32 256, 256
      %138 = vsyncadd [#allocation4], %s137
      %s139 = sshll.u32 [#allocation5], 4
      %s140 = int_to_ptr.vmem [resolvable:$true] %s139
      %145 = dma.vmem_to_hbm [thread:$0]  %s140, 256, %s3, [#allocation4], 64, 64, 4
    $region21: #{tpu_custom_call.1} parent=1 // pred_fallthru
      _
    // Predicated region
    $region22: #{tpu_custom_call.1} parent=1 // pred_check
      _
    $region23: #{tpu_custom_call.1} parent=1 // pred_check_branch
      %147 = sbr.rel (0) target = $region25
    $region24: #{tpu_custom_call.1} parent=1 // pred_region
      %148 = dma.done [#allocation4], 256
    $region25: #{tpu_custom_call.1} parent=1 // pred_fallthru
      _
    %149 = vsyncpa [#allocation3], 1
    %150 = vsyncpa [#allocation4], 1

</llo_original>
